<compile_context>
chip_gen: v7x
topology: tpu7x:2x2x1
jax: 0.10.0
libtpu: 0.0.40
codegen_flags: <defaults>
</compile_context>

<pallas_src>
import functools

import jax
import jax.numpy as jnp
from jax.experimental import pallas as pl
from jax.experimental.pallas import tpu as pltpu


def _round_up(x, m):
    return ((x + m - 1) // m) * m


def _sublane_multiple(dtype):
    itemsize = jnp.dtype(dtype).itemsize
    return {4: 8, 2: 16, 1: 32}.get(itemsize, 8)


def _vmem_limit_bytes():
    """~70% of physical VMEM (headroom for Mosaic scratch + double buffers)."""
    cap = 64 * 1024 * 1024  # conservative default (v7x per-TC)
    try:
        info = pltpu.get_tpu_info()
        cap = int(getattr(info, "vmem_capacity_bytes", cap))
    except Exception:
        pass
    cap = max(32 * 1024 * 1024, min(cap, 128 * 1024 * 1024))
    return int(cap * 0.7)


def _pick_tile_n(N, C, dtype, target_block_bytes, vmem_limit):
    """Size tiles by bytes (amortize ~0.35us/grid-step), not by a fixed row count."""
    sub = _sublane_multiple(dtype)
    bytes_per_row = max(1, C * jnp.dtype(dtype).itemsize)
    f32_row = C * 4
    # keep double-buffered native input block + ~4 f32-sized live temps in budget
    max_rows_vmem = max(sub, vmem_limit // max(1, 2 * bytes_per_row + 4 * f32_row))
    tile = target_block_bytes // bytes_per_row
    tile = min(tile, max_rows_vmem)
    tile = max(sub, (tile // sub) * sub)
    n_pad = _round_up(N, sub)
    if tile >= n_pad:
        # One tile would cover everything; prefer >=2 grid steps when N allows
        # so the "parallel" axis can shard across the 2 TensorCores on v7x.
        tile = _round_up(pl.cdiv(n_pad, 2), sub) if n_pad > sub else sub
    return int(min(tile, n_pad))


def _equilibrium_loss_kernel(pred_ref, label_ref, logmean_ref, *rest, has_weight):
    """Per-tile equilibrium loss.

    pred_ref:    (TILE_N, C)  native dtype (bf16 stays bf16 through max/sub)
    label_ref:   (TILE_N, 1)  int32
    logmean_ref: (1, C)       f32  (log of per-class mean score)
    weight_ref (optional): (TILE_N, 1) f32
    loss_ref:    (TILE_N, 1)  f32 per-sample (weighted) loss
    """
    if has_weight:
        weight_ref, loss_ref = rest
    else:
        (loss_ref,) = rest

    pred = pred_ref[...]                                   # (T, C) native dtype
    label = label_ref[...]                                 # (T, 1) int32
    log_mean = logmean_ref[...]                            # (1, C) f32

    C = pred.shape[-1]
    # label-column mask from a (1, C) iota vs (T, 1) labels (no (T,C) int temp)
    col_ids = jax.lax.broadcasted_iota(jnp.int32, (1, C), 1)
    mask = col_ids == label                                # (T, C) bool

    # numerically stable shift; max is exact in the native dtype
    row_max = jnp.max(pred, axis=-1, keepdims=True)        # (T, 1)
    shifted = pred - row_max                               # (T, C) native dtype

    # x_j = (pred_j - max) + log(mean_j)
    #   denom = sum_j exp(x_j)  == sum_j mean_j * exp(pred_j - max)
    #   lab   = x[label]        == (pred[label] - max) + log(mean[label])
    #   loss  = log(denom) - lab == -log(mean[label] * exp(pred[label]-max) / denom)
    x = shifted.astype(jnp.float32) + log_mean             # (T, C) f32
    denom = jnp.sum(jnp.exp(x), axis=-1, keepdims=True)    # (T, 1) f32 (EUP)
    lab = jnp.sum(jnp.where(mask, x, 0.0), axis=-1, keepdims=True)  # (T, 1)

    loss = jnp.log(denom) - lab                            # (T, 1)
    if has_weight:
        loss = loss * weight_ref[...]
    loss_ref[...] = loss


def equilibrium_loss_pallas(cls_score, label, mean_score, weight=None,
                            reduction='mean', avg_factor=None, tile_n=None,
                            target_block_bytes=2 * 1024 * 1024):
    """Pallas implementation of mmdet equilibrium_loss (forward).

    cls_score: (N, C) float32 or bfloat16
    label:     (N,)   integer class indices
    mean_score:(C,)   float32 (positive)
    weight:    (N,)   float32 or None
    """
    N, C = cls_score.shape
    label2d = label.astype(jnp.int32).reshape(N, 1)
    # precompute log(mean) once in the wrapper (folds the class prior into LSE)
    logmean2d = jnp.log(mean_score.astype(jnp.float32)).reshape(1, C)

    vmem_limit = _vmem_limit_bytes()
    sub = _sublane_multiple(cls_score.dtype)
    if tile_n is None:
        tile_n = _pick_tile_n(N, C, cls_score.dtype, target_block_bytes, vmem_limit)
    else:
        tile_n = max(sub, _round_up(min(int(tile_n), _round_up(N, sub)), sub))
    num_tiles = pl.cdiv(N, tile_n)

    in_specs = [
        pl.BlockSpec((tile_n, C), lambda i: (i, 0)),   # cls_score tile (native dtype)
        pl.BlockSpec((tile_n, 1), lambda i: (i, 0)),   # labels tile
        pl.BlockSpec((1, C), lambda i: (0, 0)),        # log(mean_score), resident
    ]
    args = [cls_score, label2d, logmean2d]

    has_weight = weight is not None
    if has_weight:
        w2d = weight.astype(jnp.float32).reshape(N, 1)
        in_specs.append(pl.BlockSpec((tile_n, 1), lambda i: (i, 0)))
        args.append(w2d)

    kernel = functools.partial(_equilibrium_loss_kernel, has_weight=has_weight)

    per_sample = pl.pallas_call(
        kernel,
        out_shape=jax.ShapeDtypeStruct((N, 1), jnp.float32),
        grid=(num_tiles,),
        in_specs=in_specs,
        out_specs=pl.BlockSpec((tile_n, 1), lambda i: (i, 0)),
        compiler_params=pltpu.CompilerParams(
            dimension_semantics=("parallel",),
            vmem_limit_bytes=vmem_limit,
        ),
    )(*args)

    loss = per_sample.reshape(N)

    # weight_reduce_loss semantics (weight already applied in-kernel)
    if reduction == 'mean':
        if avg_factor is None:
            return jnp.mean(loss)
        return jnp.sum(loss) / avg_factor
    elif reduction == 'sum':
        return jnp.sum(loss)
    elif reduction == 'none':
        return loss
    else:
        raise ValueError(f"invalid reduction {reduction}")


class EquilibriumLoss:
    """JAX/Pallas port of mmdet EquilibriumLoss (forward only)."""

    def __init__(self, use_sigmoid=False, use_mask=False, reduction='mean',
                 loss_weight=1.0):
        assert use_sigmoid is False or use_mask is False
        self.use_sigmoid = use_sigmoid
        self.use_mask = use_mask
        self.reduction = reduction
        self.loss_weight = loss_weight

    def __call__(self, cls_score, label, weight=None, mean_score=None,
                 avg_factor=None, reduction_override=None):
        assert reduction_override in (None, 'none', 'mean', 'sum')
        reduction = reduction_override if reduction_override else self.reduction
        loss_cls = self.loss_weight * equilibrium_loss_pallas(
            cls_score, label, mean_score, weight=weight,
            reduction=reduction, avg_factor=avg_factor)
        return loss_cls


def _reference(cls_score, label, mean_score, weight=None, reduction='mean',
               avg_factor=None):
    """Pure-JAX reference mirroring the PyTorch code (divide form)."""
    cls_score = cls_score.astype(jnp.float32)
    N, C = cls_score.shape
    one_hot = jax.nn.one_hot(label, C, dtype=cls_score.dtype)
    pred = cls_score - jnp.max(cls_score, axis=-1, keepdims=True)
    numer = mean_score[None, :].astype(jnp.float32) * jnp.exp(pred)
    denom = jnp.sum(numer, axis=-1, keepdims=True)
    P = numer / denom
    probs = jnp.sum(P * one_hot, axis=1)
    loss = -jnp.log(probs)
    if weight is not None:
        loss = loss * weight.astype(jnp.float32)
    if reduction == 'mean':
        return jnp.mean(loss) if avg_factor is None else jnp.sum(loss) / avg_factor
    if reduction == 'sum':
        return jnp.sum(loss)
    return loss


if __name__ == "__main__":
    key = jax.random.PRNGKey(0)
    k1, k2, k3, k4, k5, k6 = jax.random.split(key, 6)

    # --- test 1: weighted mean, default (bytes-based) tiling, f32 ---
    N, C = 8, 32
    cls_score = jax.random.normal(k1, (N, C), dtype=jnp.float32)
    label = jax.random.randint(k2, (N,), 0, C, dtype=jnp.int32)
    mean_score = jnp.abs(jax.random.normal(k3, (C,), dtype=jnp.float32)) + 0.5
    weight = jnp.abs(jax.random.normal(k4, (N,), dtype=jnp.float32)) + 0.1

    loss_mod = EquilibriumLoss(reduction='mean', loss_weight=1.0)
    out = loss_mod(cls_score, label, weight=weight, mean_score=mean_score)
    out = jax.block_until_ready(out)
    ref = _reference(cls_score, label, mean_score, weight=weight, reduction='mean')
    assert jnp.allclose(out, ref, rtol=1e-5, atol=1e-5), (out, ref)

    # --- test 2: no weight, reduction='none', explicit multi-tile grid ---
    N2, C2 = 24, 32
    cls2 = jax.random.normal(k5, (N2, C2), dtype=jnp.float32)
    lbl2 = jax.random.randint(k6, (N2,), 0, C2, dtype=jnp.int32)
    mean2 = jnp.abs(jax.random.normal(k3, (C2,), dtype=jnp.float32)) + 0.5
    out2 = equilibrium_loss_pallas(cls2, lbl2, mean2, weight=None,
                                   reduction='none', tile_n=8)
    out2 = jax.block_until_ready(out2)
    ref2 = _reference(cls2, lbl2, mean2, weight=None, reduction='none')
    assert jnp.allclose(out2, ref2, rtol=1e-5, atol=1e-5), (out2, ref2)

    # --- test 3: non-divisible N (boundary-clipped last tile), sum reduction ---
    N3 = 10
    cls3 = cls2[:N3]
    lbl3 = lbl2[:N3]
    out3 = equilibrium_loss_pallas(cls3, lbl3, mean2, weight=None,
                                   reduction='sum', tile_n=8)
    out3 = jax.block_until_ready(out3)
    ref3 = _reference(cls3, lbl3, mean2, weight=None, reduction='sum')
    assert jnp.allclose(out3, ref3, rtol=1e-5, atol=1e-5), (out3, ref3)

    # --- test 4: bf16 inputs streamed in native dtype, default tiling ---
    cls4 = cls2.astype(jnp.bfloat16)
    w4 = jnp.abs(jax.random.normal(k4, (N2,), dtype=jnp.float32)) + 0.1
    out4 = equilibrium_loss_pallas(cls4, lbl2, mean2, weight=w4, reduction='mean')
    out4 = jax.block_until_ready(out4)
    ref4 = _reference(cls4, lbl2, mean2, weight=w4, reduction='mean')
    assert jnp.allclose(out4, ref4, rtol=5e-2, atol=5e-2), (out4, ref4)

    print("KERNEL_OK")
</pallas_src>

<mosaic_0001>
module attributes {stable_mosaic.version = 11 : i64} {
  func.func @_equilibrium_loss_kernel(%arg0: i32, %arg1: memref<8x32xf32, #tpu.memory_space<vmem>>, %arg2: memref<8x1xi32, #tpu.memory_space<vmem>>, %arg3: memref<1x32xf32, #tpu.memory_space<vmem>>, %arg4: memref<8x1xf32, #tpu.memory_space<vmem>>, %arg5: memref<8x1xf32, #tpu.memory_space<vmem>>) attributes {dimension_semantics = [#tpu.dimension_semantics<parallel>], iteration_bounds = array<i64: 1>, scalar_prefetch = 0 : i64, scratch_operands = 0 : i64, tpu.core_type = #tpu.core_type<tc>, window_params = [{transform_indices = @transform_0, window_bounds = array<i64: 8, 32>}, {transform_indices = @transform_1, window_bounds = array<i64: 8, 1>}, {pipeline_mode = #tpu.pipeline_mode<synchronous>, transform_indices = @transform_2, window_bounds = array<i64: 1, 32>}, {transform_indices = @transform_3, window_bounds = array<i64: 8, 1>}, {transform_indices = @transform_4, window_bounds = array<i64: 8, 1>}]} {
    %c0 = arith.constant 0 : index
    %c0_0 = arith.constant 0 : index
    %0 = vector.load %arg1[%c0, %c0_0] : memref<8x32xf32, #tpu.memory_space<vmem>>, vector<8x32xf32>
    %c0_1 = arith.constant 0 : index
    %c0_2 = arith.constant 0 : index
    %1 = vector.load %arg2[%c0_1, %c0_2] : memref<8x1xi32, #tpu.memory_space<vmem>>, vector<8x1xi32>
    %c0_3 = arith.constant 0 : index
    %c0_4 = arith.constant 0 : index
    %2 = vector.load %arg3[%c0_3, %c0_4] : memref<1x32xf32, #tpu.memory_space<vmem>>, vector<1x32xf32>
    %3 = tpu.iota {dimensions = array<i32: 1>} : vector<1x32xi32>
    %4 = vector.broadcast %3 : vector<1x32xi32> to vector<8x32xi32>
    %5 = vector.broadcast %1 : vector<8x1xi32> to vector<8x32xi32>
    %6 = arith.cmpi eq, %4, %5 : vector<8x32xi32>
    %cst = arith.constant dense<0xFF800000> : vector<8xf32>
    %7 = vector.multi_reduction <maximumf>, %0, %cst [1] : vector<8x32xf32> to vector<8xf32>
    %8 = vector.shape_cast %7 : vector<8xf32> to vector<8x1xf32>
    %9 = vector.broadcast %8 : vector<8x1xf32> to vector<8x32xf32>
    %10 = arith.subf %0, %9 : vector<8x32xf32>
    %11 = vector.broadcast %2 : vector<1x32xf32> to vector<8x32xf32>
    %12 = arith.addf %10, %11 : vector<8x32xf32>
    %13 = math.exp %12 : vector<8x32xf32>
    %cst_5 = arith.constant dense<0.000000e+00> : vector<8xf32>
    %14 = vector.multi_reduction <add>, %13, %cst_5 [1] : vector<8x32xf32> to vector<8xf32>
    %15 = vector.shape_cast %14 : vector<8xf32> to vector<8x1xf32>
    %cst_6 = arith.constant 0.000000e+00 : f32
    %16 = vector.broadcast %cst_6 : f32 to vector<8x32xf32>
    %17 = arith.select %6, %12, %16 : vector<8x32xi1>, vector<8x32xf32>
    %cst_7 = arith.constant dense<0.000000e+00> : vector<8xf32>
    %18 = vector.multi_reduction <add>, %17, %cst_7 [1] : vector<8x32xf32> to vector<8xf32>
    %19 = vector.shape_cast %18 : vector<8xf32> to vector<8x1xf32>
    %20 = math.log %15 : vector<8x1xf32>
    %21 = arith.subf %20, %19 : vector<8x1xf32>
    %c0_8 = arith.constant 0 : index
    %c0_9 = arith.constant 0 : index
    %22 = vector.load %arg4[%c0_8, %c0_9] : memref<8x1xf32, #tpu.memory_space<vmem>>, vector<8x1xf32>
    %23 = arith.mulf %21, %22 : vector<8x1xf32>
    %c0_10 = arith.constant 0 : index
    %c0_11 = arith.constant 0 : index
    %24 = vector.load %arg5[%c0_10, %c0_11] : memref<8x1xf32, #tpu.memory_space<vmem>>, vector<8x1xf32>
    tpu.vector_store %arg5[%c0_10, %c0_11], %23 {strides = array<i32>} : memref<8x1xf32, #tpu.memory_space<vmem>>, vector<8x1xf32>,
    return
  }
  func.func @transform_0(%arg0: i32) -> (i32, i32) {
    %c0_i32 = arith.constant 0 : i32
    %c0_i32_0 = arith.constant 0 : i32
    return %arg0, %c0_i32 : i32, i32
  }
  func.func @transform_1(%arg0: i32) -> (i32, i32) {
    %c0_i32 = arith.constant 0 : i32
    %c0_i32_0 = arith.constant 0 : i32
    return %arg0, %c0_i32 : i32, i32
  }
  func.func @transform_2(%arg0: i32) -> (i32, i32) {
    %c0_i32 = arith.constant 0 : i32
    %c0_i32_0 = arith.constant 0 : i32
    %c0_i32_1 = arith.constant 0 : i32
    return %c0_i32, %c0_i32_0 : i32, i32
  }
  func.func @transform_3(%arg0: i32) -> (i32, i32) {
    %c0_i32 = arith.constant 0 : i32
    %c0_i32_0 = arith.constant 0 : i32
    return %arg0, %c0_i32 : i32, i32
  }
  func.func @transform_4(%arg0: i32) -> (i32, i32) {
    %c0_i32 = arith.constant 0 : i32
    %c0_i32_0 = arith.constant 0 : i32
    return %arg0, %c0_i32 : i32, i32
  }
}

</mosaic_0001>

<llo_original>
// kernel: tpu_custom_call.1
$region0: #{tpu_custom_call.1}
  #allocation0 [shape = 'u32[]', space=smem, size = 0x4, offset = 0x4, fixed_abs, tag = 'smem constant byte address 0x4 - core index']
  #allocation1 [shape = 'u32[144,128]{1,0:T(1,128)}', space=vmem, size = 0x12000, scoped, tag = 'internal scratch']
  %s0 = inlined_call_operand.vmem [shape: f32[8,32], index: 0, kind: input, shape index: {}]
  %s1 = inlined_call_operand.vmem [shape: s32[8,1], index: 1, kind: input, shape index: {}]
  %s2 = inlined_call_operand.vmem [shape: f32[1,32], index: 2, kind: input, shape index: {}]
  %s3 = inlined_call_operand.vmem [shape: f32[8,1], index: 3, kind: input, shape index: {}]
  %s4 = inlined_call_operand.vmem [shape: f32[8,1], index: 4, kind: output, shape index: {}]
  %s5 = sld [smem:[#allocation0]]
  $region26: #{tpu_custom_call.1} parent=0
    _
  %s7 = ssub.s32 1, %s5
  %s8 = scalar_select 0, %s7, %s5
  // Predicated region
  $region2: #{tpu_custom_call.1} parent=0 // pred_check
    _
  $region3: #{tpu_custom_call.1} parent=0 // pred_check_branch
    %10 = sbr.rel (0) target = $region5
  $region4: #{tpu_custom_call.1} parent=0 // pred_region
    _
  $region5: #{tpu_custom_call.1} parent=0 // pred_fallthru
    _
  // Predicated region
  $region6: #{tpu_custom_call.1} parent=0 // pred_check
    _
  $region7: #{tpu_custom_call.1} parent=0 // pred_check_branch
    %12 = sbr.rel (0) target = $region9
  $region8: #{tpu_custom_call.1} parent=0 // pred_region
    _
  $region9: #{tpu_custom_call.1} parent=0 // pred_fallthru
    _
  // Predicated region
  $region10: #{tpu_custom_call.1} parent=0 // pred_check
    _
  $region11: #{tpu_custom_call.1} parent=0 // pred_check_branch
    %14 = sbr.rel (0) target = $region13
  $region12: #{tpu_custom_call.1} parent=0 // pred_region
    _
  $region13: #{tpu_custom_call.1} parent=0 // pred_fallthru
    _
  // Predicated region
  $region14: #{tpu_custom_call.1} parent=0 // pred_check
    _
  $region15: #{tpu_custom_call.1} parent=0 // pred_check_branch
    %16 = sbr.rel (0) target = $region17
  $region16: #{tpu_custom_call.1} parent=0 // pred_region
    _
  $region17: #{tpu_custom_call.1} parent=0 // pred_fallthru
    _
  %v17 = vld [vmem:[%s0] sm:$0xff]
  %v18 = vld [vmem:[%s1] sm:$0xff]
  %v19 = vld [vmem:[%s2] sm:$0x1]
  %v20 = vlaneseq
  %v21 = vand.u32 %v20, 127
  %22 = vset.pattern.permute.xlu0 0
  %23 = vperm.xlu0 %22, %v18
  %v24 = vpop.permute.xlu0 %23
  %vm25 = vcmp.eq.s32.totalorder %v21, %v24
  %vm26 = vcmask 261120
  %v27 = vsel %vm26, %v17, -inf
  %28 = vmax.xlane.f32.xlu0 %v27
  %v29 = vpop.xlane.xlu0 %28
  %v30 = vsub.f32 %v17, %v29
  %v32 = vlaneseq
  %v33 = vshrl.u32 %v32, 7
  %v34 = vsub.s32 0, %v33
  %v35 = vrot.slane %v19, %v34
  %v37 = vadd.f32 %v30, %v35
  %v38 = vmul.f32 %v37, 1.442695
  %v39 = vpow.pop %v38
  %v40 = vsel %vm26, %v39, 0.0
  %41 = vadd.xlane.f32.xlu0 %v40
  %v42 = vpop.xlane.xlu0 %41
  %v43 = vsel %vm25, %v37, 0.0
  %v44 = vsel %vm26, %v43, 0.0
  %45 = vadd.xlane.f32.xlu0 %v44
  %v46 = vpop.xlane.xlu0 %45
  %v47 = vlog2.pop %v42
  %v48 = vmul.f32 %v47, 0.6931472
  %v49 = vsub.f32 %v48, %v46
  %v50 = vld [vmem:[%s3] sm:$0xff]
  %v51 = vmul.f32 %v49, %v50
  %vm52 = vcmask 7168
  %53 = vst.msk [vmem:[%s4] sm:$0xff] %vm52, %v51
  // Predicated region
  $region18: #{tpu_custom_call.1} parent=0 // pred_check
    _
  $region19: #{tpu_custom_call.1} parent=0 // pred_check_branch
    %55 = sbr.rel (0) target = $region21
  $region20: #{tpu_custom_call.1} parent=0 // pred_region
    _
  $region21: #{tpu_custom_call.1} parent=0 // pred_fallthru
    _
  // Predicated region
  $region22: #{tpu_custom_call.1} parent=0 // pred_check
    _
  $region23: #{tpu_custom_call.1} parent=0 // pred_check_branch
    %57 = sbr.rel (0) target = $region25
  $region24: #{tpu_custom_call.1} parent=0 // pred_region
    _
  $region25: #{tpu_custom_call.1} parent=0 // pred_fallthru
    _

</llo_original>
